<compile_context>
chip_gen: v6e
topology: v6e:2x2x1
jax: 0.10.0
libtpu: 0.0.40
codegen_flags: <defaults>
</compile_context>

<pallas_src>
import functools
import math

import jax
import jax.numpy as jnp
from jax.experimental import pallas as pl
from jax.experimental.pallas import tpu as pltpu

_SRGB_THRESHOLD = 0.0031308
_LOG_SRGB_THRESHOLD = math.log(_SRGB_THRESHOLD)
_INV_24 = 1.0 / 2.4


def _tonemap_kernel(inv_scale_ref, gamma_ref, x_ref, o_ref, *, n_channels, apply_gamma):
    """One (image, channel)-plane sub-block: exposure -> gamma -> linear->sRGB."""
    inv_scale = inv_scale_ref[0]                       # SMEM scalar: 2 ** (-exposure)
    x = x_ref[...].astype(jnp.float32) * inv_scale     # apply_exposure (mul, not div)

    if apply_gamma:
        # Grid axis 0 walks the flattened (N, C) planes -> channel = id % C.
        c = pl.program_id(0) % n_channels
        gamma = gamma_ref[c]                           # SMEM scalar gamma of this plane
        # Single log + single exp (fused branch-coefficient selection):
        #   y = x**gamma = exp(u),  u = gamma*log(x)
        #   linear branch iff y <= T  <=>  u <= log(T)
        #   linear: 12.92*exp(u)        pow: 1.055*exp(u/2.4) - 0.055
        # x == 0 -> u = -inf (gamma > 0) -> linear branch -> exp(-inf) = 0, matching ref.
        # x < 0  -> NaN, matching jnp.power with non-integer exponent.
        t = jnp.log(x)
        u = gamma * t
        linear = u <= _LOG_SRGB_THRESHOLD
        e = jnp.exp(jnp.where(linear, u, u * _INV_24))
        out = jnp.where(linear, 12.92 * e, 1.055 * e - 0.055)
    else:
        # Fast path: gamma == 1 everywhere (module default 'constant' init).
        linear = x <= _SRGB_THRESHOLD
        e = jnp.exp(_INV_24 * jnp.log(jnp.maximum(x, _SRGB_THRESHOLD)))
        out = jnp.where(linear, 12.92 * x, 1.055 * e - 0.055)

    o_ref[...] = out.astype(o_ref.dtype)


def _sub_mult(itemsize):
    """Packed sublane multiple: 8 (f32), 16 (bf16/f16), 32 (int8/fp8)."""
    return max(8, 32 // itemsize)


def _device_tuning():
    """Generation-aware sizing. v7x (~3.2 TB/s HBM, 64 MiB VMEM, 2 TCs): bigger blocks
    amortize the ~0.35 us/step overhead; keep the VMEM budget <= 48 MiB and balance
    the grid across both cores. v5e/v6e keep ~2 MiB blocks / 32 MiB budget."""
    target_block_bytes = 2 << 20
    vmem_limit = 32 << 20
    even_grid = False
    try:
        kind = jax.devices()[0].device_kind.lower()
    except Exception:  # pragma: no cover - be robust to exotic runtimes
        kind = ""
    if "v7" in kind or "7x" in kind:
        target_block_bytes = 8 << 20
        vmem_limit = 48 << 20
        even_grid = True
    return target_block_bytes, vmem_limit, even_grid


def _choose_tiling(hw, itemsize, target_block_bytes, max_lane=4096):
    """View a flattened H*W plane as (subrows, lane_w) with lane_w % 128 == 0,
    preferring subrows % sub_mult == 0 (sublane-dense packed vregs). Returns
    (lane_w, subrows, sub_tile, padded_hw); padded_hw > hw means the plane must
    be zero-padded to padded_hw elements before reshaping."""
    sub_mult = _sub_mult(itemsize)

    lane_cands = [l for l in range(128, min(hw, max_lane) + 1, 128) if hw % l == 0]
    padded_hw = hw
    if lane_cands:
        dense = [l for l in lane_cands if (hw // l) % sub_mult == 0]
        lane_w = max(dense) if dense else max(lane_cands)
        subrows = hw // lane_w
    else:
        # No exact 128-multiple divisor: pad to a lane- and sublane-dense view.
        lane_w = 512 if hw >= 512 * sub_mult else 128
        subrows = -(-hw // lane_w)                         # ceil
        subrows = -(-subrows // sub_mult) * sub_mult       # round up to sub_mult
        padded_hw = subrows * lane_w

    # Rows per grid step: biggest sublane-dense divisor of subrows that keeps the
    # block at roughly target_block_bytes.
    sub_tile = subrows
    if subrows % sub_mult == 0:
        max_rows = max(sub_mult, target_block_bytes // (itemsize * lane_w))
        divs = [r for r in range(sub_mult, subrows + 1, sub_mult)
                if subrows % r == 0 and r <= max_rows]
        if divs:
            sub_tile = max(divs)
    return lane_w, subrows, sub_tile, padded_hw


def _even_grid_sub_tile(nc, subrows, sub_tile, sub_mult):
    """v7x only: keep both TensorCores busy by making nc * (subrows // sub_tile)
    even (ideally >= 4), without giving up sublane-dense blocks."""
    def total(st):
        return nc * (subrows // st)

    if total(sub_tile) >= 4 and total(sub_tile) % 2 == 0:
        return sub_tile
    cands = [r for r in range(sub_mult, subrows + 1, sub_mult)
             if subrows % r == 0 and r <= sub_tile]
    for r in sorted(cands, reverse=True):
        if total(r) % 2 == 0 and total(r) >= 4:
            return r
    return sub_tile


def tone_map_forward(image_nchw, camera_timestamp, exposure_params,
                     response_params, timestamp2index, *, apply_gamma=True):
    """ToneMapper.forward for response_mode='constant' (train_mode has no effect).

    `apply_gamma` is a static host-side flag: pass False when response_params is
    known to be all-ones (module default) to take the cheaper fast path."""
    n, c, h, w = image_nchw.shape
    hw = h * w
    nc = n * c
    itemsize = jnp.dtype(image_nchw.dtype).itemsize

    # camera_idx = (timestamp2index * timestamp).to(long); truncation matches torch
    # for non-negative products (true for this module's usage).
    camera_idx = (timestamp2index.astype(jnp.float32)
                  * jnp.float32(camera_timestamp)).astype(jnp.int32)
    # One scalar reciprocal in the wrapper; the kernel multiplies.
    inv_scale = (2.0 ** (-exposure_params[camera_idx])).reshape(1).astype(jnp.float32)

    # Per-channel gamma exponents, delivered once via SMEM (grid-invariant).
    gamma = response_params.reshape(c).astype(jnp.float32)

    target_block_bytes, vmem_limit, even_grid = _device_tuning()
    lane_w, subrows, sub_tile, padded_hw = _choose_tiling(hw, itemsize, target_block_bytes)
    if even_grid:
        sub_tile = _even_grid_sub_tile(nc, subrows, sub_tile, _sub_mult(itemsize))

    flat = image_nchw.reshape(nc, hw)
    if padded_hw != hw:
        # Zero padding is harmless: the kernel is purely elementwise and the pad
        # region is sliced off below.
        flat = jnp.pad(flat, ((0, 0), (0, padded_hw - hw)))
    x3d = flat.reshape(nc, subrows, lane_w)

    kernel = functools.partial(_tonemap_kernel, n_channels=c, apply_gamma=apply_gamma)

    out3d = pl.pallas_call(
        kernel,
        out_shape=jax.ShapeDtypeStruct((nc, subrows, lane_w), image_nchw.dtype),
        grid=(nc, subrows // sub_tile),
        in_specs=[
            pl.BlockSpec(memory_space=pltpu.MemorySpace.SMEM),   # inv exposure scale (1,)
            pl.BlockSpec(memory_space=pltpu.MemorySpace.SMEM),   # per-channel gamma (C,)
            pl.BlockSpec((1, sub_tile, lane_w), lambda i, j: (i, j, 0)),
        ],
        out_specs=pl.BlockSpec((1, sub_tile, lane_w), lambda i, j: (i, j, 0)),
        compiler_params=pltpu.CompilerParams(
            dimension_semantics=("parallel", "parallel"),
            vmem_limit_bytes=vmem_limit,
        ),
    )(inv_scale, gamma, x3d)

    out_flat = out3d.reshape(nc, padded_hw)
    if padded_hw != hw:
        out_flat = out_flat[:, :hw]
    return out_flat.reshape(n, c, h, w)


def tone_map_ref(image_nchw, camera_timestamp, exposure_params,
                 response_params, timestamp2index):
    """Pure-JAX reference matching the PyTorch semantics."""
    idx = (timestamp2index.astype(jnp.float32)
           * jnp.float32(camera_timestamp)).astype(jnp.int32)
    img = image_nchw / 2.0 ** exposure_params[idx]
    img = jnp.power(img, response_params)               # (1, C, 1, 1) broadcast
    return jnp.where(
        img <= _SRGB_THRESHOLD,
        img * 12.92,
        jnp.power(jnp.maximum(img, _SRGB_THRESHOLD), _INV_24) * 1.055 - 0.055,
    )


if __name__ == "__main__":
    key = jax.random.PRNGKey(0)
    k_img, k_exp, k_img2 = jax.random.split(key, 3)

    N, C, H, W = 2, 3, 32, 32
    n_cameras = 4
    camera_timestamp = 0.7          # -> camera_idx = int(3 * 0.7) = 2

    exposure_params = 0.25 * jax.random.normal(k_exp, (n_cameras,), dtype=jnp.float32)
    timestamp2index = jnp.asarray(n_cameras - 1, dtype=jnp.float32)
    image = jax.random.uniform(k_img, (N, C, H, W), dtype=jnp.float32,
                               minval=0.0, maxval=2.0)

    # 1) General path: learned (non-unit) per-channel gamma, fused single-exp formulation.
    response_params = jnp.array([1.10, 0.92, 1.03], dtype=jnp.float32).reshape(1, C, 1, 1)
    out = jax.block_until_ready(
        tone_map_forward(image, camera_timestamp, exposure_params,
                         response_params, timestamp2index, apply_gamma=True))
    ref = tone_map_ref(image, camera_timestamp, exposure_params,
                       response_params, timestamp2index)
    assert out.shape == (N, C, H, W)
    assert jnp.allclose(out, ref, atol=2e-5, rtol=2e-5), "mismatch (gamma path)"

    # 2) Fast path: module default 'constant' init (gamma == 1), static flag, no sync.
    response_ones = jnp.ones((1, C, 1, 1), dtype=jnp.float32)
    out1 = jax.block_until_ready(
        tone_map_forward(image, camera_timestamp, exposure_params,
                         response_ones, timestamp2index, apply_gamma=False))
    ref1 = tone_map_ref(image, camera_timestamp, exposure_params,
                        response_ones, timestamp2index)
    assert jnp.allclose(out1, ref1, atol=2e-5, rtol=2e-5), "mismatch (fast path)"

    # 3) Odd spatial size: exercises the pad-to-dense fallback (no whole-plane blocks).
    Ho, Wo = 17, 17
    image_odd = jax.random.uniform(k_img2, (N, C, Ho, Wo), dtype=jnp.float32,
                                   minval=0.0, maxval=2.0)
    out_o = jax.block_until_ready(
        tone_map_forward(image_odd, camera_timestamp, exposure_params,
                         response_params, timestamp2index, apply_gamma=True))
    ref_o = tone_map_ref(image_odd, camera_timestamp, exposure_params,
                         response_params, timestamp2index)
    assert jnp.allclose(out_o, ref_o, atol=2e-5, rtol=2e-5), "mismatch (padded path)"

    # 4) bf16 streaming (dtype-aware tiling); looser tolerance for bf16 output rounding.
    image_bf16 = image.astype(jnp.bfloat16)
    out_b = jax.block_until_ready(
        tone_map_forward(image_bf16, camera_timestamp, exposure_params,
                         response_params, timestamp2index, apply_gamma=True))
    ref_b = tone_map_ref(image_bf16.astype(jnp.float32), camera_timestamp, exposure_params,
                         response_params, timestamp2index)
    assert jnp.allclose(out_b.astype(jnp.float32), ref_b, atol=2e-2, rtol=2e-2), \
        "mismatch (bf16 path)"

    print("KERNEL_OK")
</pallas_src>

<mosaic_0001>
module attributes {stable_mosaic.version = 11 : i64} {
  func.func @_tonemap_kernel(%arg0: i32, %arg1: i32, %arg2: memref<1xf32, #tpu.memory_space<smem>>, %arg3: memref<3xf32, #tpu.memory_space<smem>>, %arg4: memref<1x8x128xf32, #tpu.memory_space<vmem>>, %arg5: memref<1x8x128xf32, #tpu.memory_space<vmem>>) attributes {dimension_semantics = [#tpu.dimension_semantics<parallel>, #tpu.dimension_semantics<parallel>], iteration_bounds = array<i64: 6, 1>, scalar_prefetch = 0 : i64, scratch_operands = 0 : i64, tpu.core_type = #tpu.core_type<tc>, window_params = [{transform_indices = @transform_0, window_bounds = array<i64: 1>}, {transform_indices = @transform_1, window_bounds = array<i64: 3>}, {transform_indices = @transform_2, window_bounds = array<i64: 1, 8, 128>}, {transform_indices = @transform_3, window_bounds = array<i64: 1, 8, 128>}]} {
    %c0 = arith.constant 0 : index
    %0 = memref.load %arg2[%c0] : memref<1xf32, #tpu.memory_space<smem>>
    %c0_0 = arith.constant 0 : index
    %c0_1 = arith.constant 0 : index
    %c0_2 = arith.constant 0 : index
    %1 = vector.load %arg4[%c0_0, %c0_1, %c0_2] : memref<1x8x128xf32, #tpu.memory_space<vmem>>, vector<1x8x128xf32>
    %2 = vector.broadcast %0 : f32 to vector<1x8x128xf32>
    %3 = arith.mulf %1, %2 : vector<1x8x128xf32>
    %c3_i32 = arith.constant 3 : i32
    %c0_i32 = arith.constant 0 : i32
    %4 = arith.cmpi eq, %c3_i32, %c0_i32 : i32
    %c1_i32 = arith.constant 1 : i32
    %5 = arith.select %4, %c1_i32, %c3_i32 : i32
    %6 = arith.remsi %arg0, %5 : i32
    %c0_i32_3 = arith.constant 0 : i32
    %7 = arith.cmpi ne, %6, %c0_i32_3 : i32
    %c0_i32_4 = arith.constant 0 : i32
    %8 = arith.cmpi slt, %6, %c0_i32_4 : i32
    %c0_i32_5 = arith.constant 0 : i32
    %9 = arith.cmpi slt, %5, %c0_i32_5 : i32
    %10 = arith.xori %8, %9 : i1
    %11 = arith.andi %10, %7 : i1
    %12 = arith.addi %6, %5 : i32
    %13 = arith.select %11, %12, %6 : i32
    %14 = arith.index_cast %13 : i32 to index
    %15 = memref.load %arg3[%14] : memref<3xf32, #tpu.memory_space<smem>>
    %16 = math.log %3 : vector<1x8x128xf32>
    %17 = vector.broadcast %15 : f32 to vector<1x8x128xf32>
    %18 = arith.mulf %17, %16 : vector<1x8x128xf32>
    %cst = arith.constant -5.76646662 : f32
    %19 = vector.broadcast %cst : f32 to vector<1x8x128xf32>
    %20 = arith.cmpf ole, %18, %19 : vector<1x8x128xf32>
    %cst_6 = arith.constant 0.416666657 : f32
    %21 = vector.broadcast %cst_6 : f32 to vector<1x8x128xf32>
    %22 = arith.mulf %18, %21 : vector<1x8x128xf32>
    %23 = arith.select %20, %18, %22 : vector<1x8x128xi1>, vector<1x8x128xf32>
    %24 = math.exp %23 : vector<1x8x128xf32>
    %cst_7 = arith.constant 1.292000e+01 : f32
    %25 = vector.broadcast %cst_7 : f32 to vector<1x8x128xf32>
    %26 = arith.mulf %25, %24 : vector<1x8x128xf32>
    %cst_8 = arith.constant 1.055000e+00 : f32
    %27 = vector.broadcast %cst_8 : f32 to vector<1x8x128xf32>
    %28 = arith.mulf %27, %24 : vector<1x8x128xf32>
    %cst_9 = arith.constant 5.500000e-02 : f32
    %29 = vector.broadcast %cst_9 : f32 to vector<1x8x128xf32>
    %30 = arith.subf %28, %29 : vector<1x8x128xf32>
    %31 = arith.select %20, %26, %30 : vector<1x8x128xi1>, vector<1x8x128xf32>
    %c0_10 = arith.constant 0 : index
    %c0_11 = arith.constant 0 : index
    %c0_12 = arith.constant 0 : index
    %32 = vector.load %arg5[%c0_10, %c0_11, %c0_12] : memref<1x8x128xf32, #tpu.memory_space<vmem>>, vector<1x8x128xf32>
    tpu.vector_store %arg5[%c0_10, %c0_11, %c0_12], %31 {strides = array<i32>} : memref<1x8x128xf32, #tpu.memory_space<vmem>>, vector<1x8x128xf32>,
    return
  }
  func.func @transform_0(%arg0: i32, %arg1: i32) -> i32 {
    %c0_i32 = arith.constant 0 : i32
    %c0_i32_0 = arith.constant 0 : i32
    return %c0_i32 : i32
  }
  func.func @transform_1(%arg0: i32, %arg1: i32) -> i32 {
    %c0_i32 = arith.constant 0 : i32
    %c0_i32_0 = arith.constant 0 : i32
    return %c0_i32 : i32
  }
  func.func @transform_2(%arg0: i32, %arg1: i32) -> (i32, i32, i32) {
    %c0_i32 = arith.constant 0 : i32
    %c0_i32_0 = arith.constant 0 : i32
    return %arg0, %arg1, %c0_i32 : i32, i32, i32
  }
  func.func @transform_3(%arg0: i32, %arg1: i32) -> (i32, i32, i32) {
    %c0_i32 = arith.constant 0 : i32
    %c0_i32_0 = arith.constant 0 : i32
    return %arg0, %arg1, %c0_i32 : i32, i32, i32
  }
}

</mosaic_0001>

<llo_original>
// kernel: tpu_custom_call.1
$region0: #{tpu_custom_call.1}
  #allocation0 [shape = 'u32[]', space=smem, size = 0x4, offset = 0x4, fixed_abs, tag = 'smem constant byte address 0x4 - core index']
  #allocation1 [shape = 'u32[144,128]{1,0:T(1,128)}', space=vmem, size = 0x12000, scoped, tag = 'internal scratch']
  #allocation2 [shape = 'f32[1]{0:T(128)S(6)}', space=smem, size = 0x200, scoped, tag = 'scoped memory for tpu_custom_call.1']
  %s0 = inlined_call_operand.<no memory space> [shape: f32[1], index: 0, kind: input, shape index: {}]
  %s1 = inlined_call_operand.vmem [shape: f32[3], index: 1, kind: input, shape index: {}]
  %s2 = inlined_call_operand.hbm [shape: f32[6,8,128], index: 2, kind: input, shape index: {}]
  %s3 = inlined_call_operand.hbm [shape: f32[6,8,128], index: 3, kind: output, shape index: {}]
  %s4 = sld [smem:[#allocation0]]
  $region53: #{tpu_custom_call.1} parent=0
    _
  %s6 = ssub.s32 1, %s4
  %s7 = scalar_select 0, %s6, %s4
  %8 = sst [smem:[#allocation2]] %s0
  $region1: #{tpu_custom_call.1} parent=0
    #allocation3 [shape = 'u8[512]{0}', space=smem, size = 0x200, scoped, tag = 'input window, operand 1, single buffered']
    #allocation4 [shape = 's32[2]{0}', space=sflag, size = 0x8, scoped, tag = 'scoped memory for tpu_custom_call.1']
    #allocation5 [shape = 's32[2]{0}', space=sflag, size = 0x8, scoped, tag = 'scoped memory for tpu_custom_call.1']
    #allocation6 [shape = 's32[2]{0}', space=sflag, size = 0x8, scoped, tag = 'scoped memory for tpu_custom_call.1']
    #allocation7 [shape = 'u8[8192]{0}', space=vmem, size = 0x2000, scoped, tag = 'input window, operand 2']
    #allocation8 [shape = 'u8[8192]{0}', space=vmem, size = 0x2000, scoped, tag = 'output window, operand 0']
    %9 = vsyncpa [#allocation6], 0
    %10 = vsyncpa [#allocation4], 0
    %s11 = scalar_lea.sflag [#allocation4], 1
    %12 = vsyncpa %s11, 0
    %13 = vsyncpa [#allocation5], 0
    %s14 = scalar_lea.sflag [#allocation5], 1
    %15 = vsyncpa %s14, 0
    loop: start=0, step=1, limit=8
    $region2: #{tpu_custom_call.1} parent=1 // loop_pre_header
      _
    $region3: #{tpu_custom_call.1} parent=1 // loop_header
      %s17 = sphi 0, %s21
      %p18 = scmp.ge.s32.totalorder %s17, 8
      %s24 = sphi 0, %s36
      %s25 = sphi 0, %s32
      %s26 = sphi 0, %s24
      %s27 = sphi 0, %s25
      %s28 = sphi 0, %s26
      %s29 = sphi 0, %s27
      %s37 = sphi 0, %s37
      %s39 = sphi 0, %s37
      %s40 = sphi 0, %s39
      %s54 = sphi 0, %s40
      %s58 = sphi 0, %s58
      %s60 = sphi 0, %s58
      %s61 = sphi 0, %s60
      %s75 = sphi 0, %s61
      %s83 = sphi 0, %s85
      %s86 = sphi 0, %s83
      %s87 = sphi 0, %s86
      %s103 = sphi 0, %s87
      %s111 = sphi 0, %s113
      %s114 = sphi 0, %s111
      %s115 = sphi 0, %s114
      %s131 = sphi 0, %s115
    $region4: #{tpu_custom_call.1} parent=1 // loop_header_branch
      %20 = sbr.rel (%p18) target = $region8
    $region5: #{tpu_custom_call.1} parent=1 // loop_body
      %s22 = ssub.s32 %s17, 1
      %s23 = ssub.s32 %s17, 2
      %s30 = sadd.s32 1, %s25
      %p31 = scmp.ge.s32.totalorder %s30, 1
      %s32 = scalar_select %p31, 0, %s30
      %s33 = sadd.s32 1, %s24
      %s34 = scalar_select %p31, %s33, %s24
      %p35 = scmp.ge.s32.totalorder %s34, 6
      %s36 = scalar_select %p35, 0, %s34
      %s38 = sadd.s32 %s37, 1
      %p41 = scmp.eq.s32.totalorder %s17, 5
      %p42 = scmp.ne.s32.totalorder %s37, %s39
      %p43 = scmp.eq.s32.totalorder %s17, 0
      %p44 = por %p42, %p43
      %p45 = scmp.ne.s32.totalorder %s37, %s39
      %p46 = scmp.eq.s32.totalorder %s22, 5
      %p47 = por %p45, %p46
      %p48 = scmp.ne.s32.totalorder %s39, %s40
      %p49 = scmp.eq.s32.totalorder %s22, 0
      %p50 = por %p48, %p49
      %p51 = scmp.ne.s32.totalorder %s39, %s40
      %p52 = scmp.eq.s32.totalorder %s23, 5
      %p53 = por %p51, %p52
      %p55 = scmp.ne.s32.totalorder %s40, %s54
      %p56 = scmp.eq.s32.totalorder %s23, 0
      %p57 = por %p55, %p56
      %s59 = sadd.s32 %s58, 1
      %p62 = scmp.eq.s32.totalorder %s17, 5
      %p63 = scmp.ne.s32.totalorder %s58, %s60
      %p64 = scmp.eq.s32.totalorder %s17, 0
      %p65 = por %p63, %p64
      %p66 = scmp.ne.s32.totalorder %s58, %s60
      %p67 = scmp.eq.s32.totalorder %s22, 5
      %p68 = por %p66, %p67
      %p69 = scmp.ne.s32.totalorder %s60, %s61
      %p70 = scmp.eq.s32.totalorder %s22, 0
      %p71 = por %p69, %p70
      %p72 = scmp.ne.s32.totalorder %s60, %s61
      %p73 = scmp.eq.s32.totalorder %s23, 5
      %p74 = por %p72, %p73
      %p76 = scmp.ne.s32.totalorder %s61, %s75
      %p77 = scmp.eq.s32.totalorder %s23, 0
      %p78 = por %p76, %p77
      %s79 = ssub.s32 %s24, %s36
      %s80 = ssub.s32 %s25, %s32
      %s81 = sor.u32 %s79, %s80
      %p82 = scmp.eq.s32.totalorder %s81, 0
      %s84 = sadd.s32 %s83, 1
      %s85 = scalar_select %p82, %s83, %s84
      %p88 = pneg %p82
      %p89 = scmp.eq.s32.totalorder %s17, 5
      %p90 = por %p88, %p89
      %p91 = scmp.ne.s32.totalorder %s83, %s86
      %p92 = scmp.eq.s32.totalorder %s17, 0
      %p93 = por %p91, %p92
      %p94 = scmp.ne.s32.totalorder %s83, %s86
      %p95 = scmp.eq.s32.totalorder %s22, 5
      %p96 = por %p94, %p95
      %p97 = scmp.ne.s32.totalorder %s86, %s87
      %p98 = scmp.eq.s32.totalorder %s22, 0
      %p99 = por %p97, %p98
      %p100 = scmp.ne.s32.totalorder %s86, %s87
      %p101 = scmp.eq.s32.totalorder %s23, 5
      %p102 = por %p100, %p101
      %p104 = scmp.ne.s32.totalorder %s87, %s103
      %p105 = scmp.eq.s32.totalorder %s23, 0
      %p106 = por %p104, %p105
      %s107 = ssub.s32 %s24, %s36
      %s108 = ssub.s32 %s25, %s32
      %s109 = sor.u32 %s107, %s108
      %p110 = scmp.eq.s32.totalorder %s109, 0
      %s112 = sadd.s32 %s111, 1
      %s113 = scalar_select %p110, %s111, %s112
      %p116 = pneg %p110
      %p117 = scmp.eq.s32.totalorder %s17, 5
      %p118 = por %p116, %p117
      %p119 = scmp.ne.s32.totalorder %s111, %s114
      %p120 = scmp.eq.s32.totalorder %s17, 0
      %p121 = por %p119, %p120
      %p122 = scmp.ne.s32.totalorder %s111, %s114
      %p123 = scmp.eq.s32.totalorder %s22, 5
      %p124 = por %p122, %p123
      %p125 = scmp.ne.s32.totalorder %s114, %s115
      %p126 = scmp.eq.s32.totalorder %s22, 0
      %p127 = por %p125, %p126
      %p128 = scmp.ne.s32.totalorder %s114, %s115
      %p129 = scmp.eq.s32.totalorder %s23, 5
      %p130 = por %p128, %p129
      %p132 = scmp.ne.s32.totalorder %s115, %s131
      %p133 = scmp.eq.s32.totalorder %s23, 0
      %p134 = por %p132, %p133
      %p135 = scmp.le.s32.totalorder 1, %s17
      %p136 = scmp.lt.s32.totalorder %s17, 7
      %p137 = pnand %p135, %p136
      %p138 = pneg %p137
      // Predicated region
      $region9: #{tpu_custom_call.1} parent=5 // pred_check
        _
      $region10: #{tpu_custom_call.1} parent=5 // pred_check_branch
        %140 = sbr.rel (%p137) target = $region12
      $region11: #{tpu_custom_call.1} parent=5 // pred_region
        %s141 = ssub.s32 %s17, 1
        // Predicated region
        $region13: #{tpu_custom_call.1} parent=11 // pred_check
          %p142 = pneg %p50
        $region14: #{tpu_custom_call.1} parent=11 // pred_check_branch
          %144 = sbr.rel (%p142) target = $region16
        $region15: #{tpu_custom_call.1} parent=11 // pred_region
          _
        $region16: #{tpu_custom_call.1} parent=11 // pred_fallthru
          _
        // Predicated region
        $region17: #{tpu_custom_call.1} parent=11 // pred_check
          %p145 = pneg %p71
        $region18: #{tpu_custom_call.1} parent=11 // pred_check_branch
          %147 = sbr.rel (%p145) target = $region20
        $region19: #{tpu_custom_call.1} parent=11 // pred_region
          %s149 = ssub.s32 16, 16
          %150 = vsyncadd [#allocation6], %s149
          %s152 = sshll.u32 %s1, 4
          %s153 = int_to_ptr.vmem [resolvable:$true] %s152
          %155 = dma.vmem_to_smem %s153, 16, [#allocation3], [#allocation6]
        $region20: #{tpu_custom_call.1} parent=11 // pred_fallthru
          _
      $region12: #{tpu_custom_call.1} parent=5 // pred_fallthru
        _
      %p156 = scmp.lt.s32.totalorder %s17, 6
      // Predicated region
      $region21: #{tpu_custom_call.1} parent=5 // pred_check
        %p157 = pneg %p156
      $region22: #{tpu_custom_call.1} parent=5 // pred_check_branch
        %159 = sbr.rel (%p157) target = $region24
      $region23: #{tpu_custom_call.1} parent=5 // pred_region
        // Predicated region
        $region25: #{tpu_custom_call.1} parent=23 // pred_check
          %p160 = pneg %p93
        $region26: #{tpu_custom_call.1} parent=23 // pred_check_branch
          %162 = sbr.rel (%p160) target = $region28
        $region27: #{tpu_custom_call.1} parent=23 // pred_region
          %s163 = sand.u32 %s83, 1
          %s164 = scalar_lea.sflag [#allocation4], %s163
          %s165 = sand.u32 %s83, 1
          %s166 = smul.addr %s165, 8
          %s167 = scalar_lea.vmem [#allocation7], %s166
          %s169 = ssub.s32 128, 128
          %170 = vsyncadd %s164, %s169
          %s171 = sadd.s32 %s25, %s24
          %s172 = smul.addr %s171, 128
          %s173 = scalar_lea.hbm %s2, %s172
          %s175 = sshll.u32 %s167, 4
          %s176 = int_to_ptr.vmem [resolvable:$true] %s175
          %178 = dma.hbm_to_vmem [thread:$0]  %s173, 128, %s176, %s164
        $region28: #{tpu_custom_call.1} parent=23 // pred_fallthru
          _
      $region24: #{tpu_custom_call.1} parent=5 // pred_fallthru
        _
      %p179 = scmp.le.s32.totalorder 1, %s17
      %p180 = scmp.lt.s32.totalorder %s17, 7
      %p181 = pnand %p179, %p180
      %p182 = pneg %p181
      // Predicated region
      $region29: #{tpu_custom_call.1} parent=5 // pred_check
        _
      $region30: #{tpu_custom_call.1} parent=5 // pred_check_branch
        %184 = sbr.rel (%p181) target = $region32
      $region31: #{tpu_custom_call.1} parent=5 // pred_region
        %s185 = ssub.s32 %s17, 1
        // Predicated region
        $region33: #{tpu_custom_call.1} parent=31 // pred_check
          %p186 = pneg %p71
        $region34: #{tpu_custom_call.1} parent=31 // pred_check_branch
          %188 = sbr.rel (%p186) target = $region36
        $region35: #{tpu_custom_call.1} parent=31 // pred_region
          %189 = dma.done [#allocation6], 16
        $region36: #{tpu_custom_call.1} parent=31 // pred_fallthru
          _
        %s190 = sand.u32 %s86, 1
        %s191 = scalar_lea.sflag [#allocation4], %s190
        %s192 = sand.u32 %s86, 1
        %s193 = smul.addr %s192, 8
        %s194 = scalar_lea.vmem [#allocation7], %s193
        // Predicated region
        $region37: #{tpu_custom_call.1} parent=31 // pred_check
          %p195 = pneg %p99
        $region38: #{tpu_custom_call.1} parent=31 // pred_check_branch
          %197 = sbr.rel (%p195) target = $region40
        $region39: #{tpu_custom_call.1} parent=31 // pred_region
          %198 = dma.done %s191, 128
        $region40: #{tpu_custom_call.1} parent=31 // pred_fallthru
          _
        %199 = sfence
        %p200 = pneg %p50
        %p201 = pneg %p47
        %p202 = pneg %p71
        %p203 = pneg %p68
        %s204 = sand.u32 %s86, 1
        %s205 = scalar_lea.sflag [#allocation4], %s204
        %s206 = sand.u32 %s86, 1
        %s207 = smul.addr %s206, 8
        %s208 = scalar_lea.vmem [#allocation7], %s207
        %p209 = pneg %p99
        %p210 = pneg %p96
        %p211 = pneg %p127
        %p212 = pneg %p124
        %s213 = sand.u32 %s114, 1
        %s214 = scalar_lea.sflag [#allocation5], %s213
        %s215 = sand.u32 %s114, 1
        %s216 = smul.addr %s215, 8
        %s217 = scalar_lea.vmem [#allocation8], %s216
        %s218 = sld [smem:[#allocation2]]
        %v219 = vld [vmem:[%s194] sm:$0xff]
        %v220 = vstv %s218
        %v221 = vmul.f32 %v219, %v220
        %p222 = scmp.lt.s32.totalorder %s26, 0
        %s223 = ssub.s32 0, %s26
        %s224 = scalar_select %p222, %s223, %s26
        %s225 = sdiv.u32.pop %s224, 3
        %s226 = srem.u32.pop %s224, 3
        %s227 = ssub.s32 0, %s226
        %s228 = scalar_select %p222, %s227, %s226
        %p229 = scmp.ne.s32.totalorder %s228, 0
        %p230 = scmp.lt.s32.totalorder %s228, 0
        %p231 = pnand %p230, %p229
        %p232 = pneg %p231
        %s233 = sadd.s32 %s228, 3
        %s234 = scalar_select %p232, %s233, %s228
        %s235 = sld [smem:[#allocation3 + %s234]]
        %v236 = vlog2.pop %v221
        %v237 = vmul.f32 %v236, 0.6931472
        %v238 = vstv %s235
        %v239 = vmul.f32 %v238, %v237
        %vm240 = vcmp.le.f32.partialorder %v239, -5.7664666
        %v241 = vmul.f32 %v239, 0.41666666
        %v242 = vsel %vm240, %v239, %v241
        %v243 = vmul.f32 %v242, 1.442695
        %v244 = vpow.pop %v243
        %v245 = vmul.f32 %v244, 12.92
        %v246 = vmul.f32 %v244, 1.055
        %v247 = vsub.f32 %v246, 0.055
        %v248 = vsel %vm240, %v245, %v247
        %249 = vst [vmem:[%s217] sm:$0xff] %v248
        %s250 = sand.u32 %s114, 1
        %s251 = scalar_lea.sflag [#allocation5], %s250
        %s252 = sand.u32 %s114, 1
        %s253 = smul.addr %s252, 8
        %s254 = scalar_lea.vmem [#allocation8], %s253
        // Predicated region
        $region41: #{tpu_custom_call.1} parent=31 // pred_check
          %p255 = pneg %p124
        $region42: #{tpu_custom_call.1} parent=31 // pred_check_branch
          %257 = sbr.rel (%p255) target = $region44
        $region43: #{tpu_custom_call.1} parent=31 // pred_region
          %s259 = ssub.s32 128, 128
          %260 = vsyncadd %s251, %s259
          %s261 = sadd.s32 %s27, %s26
          %s262 = smul.addr %s261, 128
          %s263 = scalar_lea.hbm %s3, %s262
          %s265 = sshll.u32 %s254, 4
          %s266 = int_to_ptr.vmem [resolvable:$true] %s265
          %268 = dma.vmem_to_hbm [thread:$0]  %s266, 128, %s263, %s251
        $region44: #{tpu_custom_call.1} parent=31 // pred_fallthru
          _
      $region32: #{tpu_custom_call.1} parent=5 // pred_fallthru
        _
      %p269 = scmp.le.s32.totalorder 2, %s17
      // Predicated region
      $region45: #{tpu_custom_call.1} parent=5 // pred_check
        %p270 = pneg %p269
      $region46: #{tpu_custom_call.1} parent=5 // pred_check_branch
        %272 = sbr.rel (%p270) target = $region48
      $region47: #{tpu_custom_call.1} parent=5 // pred_region
        %s273 = ssub.s32 %s17, 2
        // Predicated region
        $region49: #{tpu_custom_call.1} parent=47 // pred_check
          %p274 = pneg %p130
        $region50: #{tpu_custom_call.1} parent=47 // pred_check_branch
          %276 = sbr.rel (%p274) target = $region52
        $region51: #{tpu_custom_call.1} parent=47 // pred_region
          %s277 = sand.u32 %s115, 1
          %s278 = scalar_lea.sflag [#allocation5], %s277
          %s279 = sand.u32 %s115, 1
          %s280 = smul.addr %s279, 8
          %s281 = scalar_lea.vmem [#allocation8], %s280
          %282 = dma.done %s278, 128
        $region52: #{tpu_custom_call.1} parent=47 // pred_fallthru
          _
      $region48: #{tpu_custom_call.1} parent=5 // pred_fallthru
        _
    $region6: #{tpu_custom_call.1} parent=1 // loop_footer
      %s21 = sadd.s32 1, %s17
    $region7: #{tpu_custom_call.1} parent=1 // loop_footer_branch
      %16 = sbr.rel target = $region3
    $region8: #{tpu_custom_call.1} parent=1 // loop_exit
      _
    %283 = vsyncpa [#allocation4], 1
    %s284 = scalar_lea.sflag [#allocation4], 1
    %285 = vsyncpa %s284, 1
    %286 = vsyncpa [#allocation5], 1
    %s287 = scalar_lea.sflag [#allocation5], 1
    %288 = vsyncpa %s287, 1
    %289 = vsyncpa [#allocation6], 1
    %s290 = scalar_lea.sflag [#allocation6], 1
    %291 = vsyncpa %s290, 1

</llo_original>
